<compile_context>
chip_gen: v7x
topology: tpu7x:2x2x1
jax: 0.10.0
libtpu: 0.0.40
codegen_flags: <defaults>
</compile_context>

<pallas_src>
import jax
import jax.numpy as jnp
from jax import lax
from jax.experimental import pallas as pl
from jax.experimental.pallas import tpu as pltpu


def mlp_kernel(x_ref, w1_ref, b1_ref, w2_ref, b2_ref, w3t_ref, b3c_ref, o_ref):
    # x tile: (bm/P, P*D) bf16 — P batch rows packed side-by-side on the lane axis.
    x = x_ref[...]

    # Layer 1: block-diag Linear(D -> H1) + ReLU.   (Dropout = identity in eval mode.)
    h1 = jnp.dot(x, w1_ref[...], preferred_element_type=jnp.float32) + b1_ref[...]
    h1 = jnp.maximum(h1, 0.0).astype(jnp.bfloat16)

    # Layer 2: block-diag Linear(H1 -> H2) + ReLU.  (Dropout = identity in eval mode.)
    h2 = jnp.dot(h1, w2_ref[...], preferred_element_type=jnp.float32) + b2_ref[...]
    h2 = jnp.maximum(h2, 0.0).astype(jnp.bfloat16)

    # Classifier computed transposed so the batch stays on the lane axis:
    #   logits[g*C + c, i] = sum_k w3t[g*C + c, k] * h2[i, k] + b3[c]
    # Contraction is on both operands' last dim (the q @ k.T pattern), so no explicit
    # transpose/relayout is materialized and the (P*C, bm/P) store is lane-dense.
    logits = lax.dot_general(
        w3t_ref[...], h2,
        dimension_numbers=(((1,), (1,)), ((), ())),
        preferred_element_type=jnp.float32,
    ) + b3c_ref[...]
    o_ref[...] = jax.nn.sigmoid(logits).astype(o_ref.dtype)


def _round_up(v, m):
    return ((v + m - 1) // m) * m


def baseline_dnn_forward(x, params, *, bm=None, bm_cap=8192):
    """x: [B, input_dim] float32. Returns sigmoid(classifier(features(x))).squeeze()."""
    w1, b1, w2, b2, w3, b3 = params
    B, D = x.shape
    H1 = w1.shape[1]
    H2 = w2.shape[1]
    C = w3.shape[1]  # num_classes

    # Row-packing factor: put P batch rows side-by-side on the 128-lane axis so
    # MXU pushes / x vregs are (nearly) lane-full instead of D/128 full.
    P = max(1, 128 // D)
    align = 128 * P  # keeps packed-x sublanes and packed-output lanes tile-aligned

    if bm is None:
        bm = min(bm_cap, _round_up(max(B, 1), align))
    else:
        bm = _round_up(bm, align)
    B_pad = _round_up(B, bm)
    n_tiles = B_pad // bm

    if B_pad != B:
        x = jnp.pad(x, ((0, B_pad - B), (0, 0)))

    # bf16 operands (MXU-native); accumulation inside the kernel is f32.
    xp = x.astype(jnp.bfloat16).reshape(B_pad // P, P * D)

    eye = jnp.eye(P, dtype=jnp.float32)
    w1p = jnp.kron(eye, w1).astype(jnp.bfloat16)                      # (P*D,  P*H1) block-diag
    w2p = jnp.kron(eye, w2).astype(jnp.bfloat16)                      # (P*H1, P*H2) block-diag
    w3p = jnp.kron(eye, w3.T).astype(jnp.bfloat16)                    # (P*C,  P*H2) block-diag
    b1p = jnp.tile(b1.reshape(1, -1), (1, P)).astype(jnp.float32)     # (1, P*H1)
    b2p = jnp.tile(b2.reshape(1, -1), (1, P)).astype(jnp.float32)     # (1, P*H2)
    b3p = jnp.tile(b3.reshape(-1, 1), (P, 1)).astype(jnp.float32)     # (P*C, 1)

    out = pl.pallas_call(
        mlp_kernel,
        out_shape=jax.ShapeDtypeStruct((P * C, B_pad // P), jnp.float32),
        grid_spec=pltpu.PrefetchScalarGridSpec(
            num_scalar_prefetch=0,
            grid=(n_tiles,),
            in_specs=[
                pl.BlockSpec((bm // P, P * D), lambda i: (i, 0)),   # packed x tile
                pl.BlockSpec(w1p.shape, lambda i: (0, 0)),          # W1 block-diag (resident)
                pl.BlockSpec(b1p.shape, lambda i: (0, 0)),          # b1 (tiled)
                pl.BlockSpec(w2p.shape, lambda i: (0, 0)),          # W2 block-diag
                pl.BlockSpec(b2p.shape, lambda i: (0, 0)),          # b2 (tiled)
                pl.BlockSpec(w3p.shape, lambda i: (0, 0)),          # W3^T block-diag
                pl.BlockSpec(b3p.shape, lambda i: (0, 0)),          # b3 column (tiled)
            ],
            out_specs=pl.BlockSpec((P * C, bm // P), lambda i: (0, i)),  # lane-dense output
        ),
        compiler_params=pltpu.CompilerParams(
            dimension_semantics=("parallel",),
        ),
    )(xp, w1p, b1p, w2p, b2p, w3p, b3p)

    # (P*C, B_pad//P) -> unpack row groups -> (B, C) -> torch .squeeze() semantics.
    y = out.reshape(P, C, B_pad // P).transpose(2, 0, 1).reshape(B_pad, C)[:B]
    return jnp.squeeze(y)


def init_params(key, input_dim, hidden_dims=(64, 32), num_classes=1):
    """Deterministic init mimicking nn.Linear's uniform(-1/sqrt(fan_in), 1/sqrt(fan_in))."""
    params = []
    prev = input_dim
    dims = list(hidden_dims) + [num_classes]
    for d in dims:
        key, kw, kb = jax.random.split(key, 3)
        bound = 1.0 / jnp.sqrt(prev)
        w = jax.random.uniform(kw, (prev, d), jnp.float32, -bound, bound)
        b = jax.random.uniform(kb, (1, d), jnp.float32, -bound, bound)
        params.extend([w, b])
        prev = d
    return tuple(params)


if __name__ == "__main__":
    key = jax.random.PRNGKey(0)
    k_params, k_x = jax.random.split(key)

    # Small shapes; B=300 exercises batch padding (to 512) and the 4-way lane packing.
    B, INPUT_DIM = 300, 32
    params = init_params(k_params, INPUT_DIM, hidden_dims=(64, 32), num_classes=1)
    x = jax.random.normal(k_x, (B, INPUT_DIM), jnp.float32)

    y = jax.block_until_ready(baseline_dnn_forward(x, params))

    # Pure-JAX eval-mode f32 reference (kernel runs bf16 operands / f32 accumulation,
    # so the tolerance is relaxed accordingly).
    w1, b1, w2, b2, w3, b3 = params
    h = jnp.maximum(x @ w1 + b1, 0.0)
    h = jnp.maximum(h @ w2 + b2, 0.0)
    ref = jnp.squeeze(jax.nn.sigmoid(h @ w3 + b3))
    assert y.shape == (B,), y.shape
    err = float(jnp.max(jnp.abs(y - ref)))
    assert jnp.allclose(y, ref, atol=3e-2, rtol=3e-2), err

    print("KERNEL_OK")
</pallas_src>

<mosaic_0001>
module attributes {stable_mosaic.version = 11 : i64} {
  func.func @mlp_kernel(%arg0: i32, %arg1: memref<128x128xbf16, #tpu.memory_space<vmem>>, %arg2: memref<128x256xbf16, #tpu.memory_space<vmem>>, %arg3: memref<1x256xf32, #tpu.memory_space<vmem>>, %arg4: memref<256x128xbf16, #tpu.memory_space<vmem>>, %arg5: memref<1x128xf32, #tpu.memory_space<vmem>>, %arg6: memref<4x128xbf16, #tpu.memory_space<vmem>>, %arg7: memref<4x1xf32, #tpu.memory_space<vmem>>, %arg8: memref<4x128xf32, #tpu.memory_space<vmem>>) attributes {dimension_semantics = [#tpu.dimension_semantics<parallel>], iteration_bounds = array<i64: 1>, scalar_prefetch = 0 : i64, scratch_operands = 0 : i64, tpu.core_type = #tpu.core_type<tc>, window_params = [{transform_indices = @transform_0, window_bounds = array<i64: 128, 128>}, {pipeline_mode = #tpu.pipeline_mode<synchronous>, transform_indices = @transform_1, window_bounds = array<i64: 128, 256>}, {pipeline_mode = #tpu.pipeline_mode<synchronous>, transform_indices = @transform_2, window_bounds = array<i64: 1, 256>}, {pipeline_mode = #tpu.pipeline_mode<synchronous>, transform_indices = @transform_3, window_bounds = array<i64: 256, 128>}, {pipeline_mode = #tpu.pipeline_mode<synchronous>, transform_indices = @transform_4, window_bounds = array<i64: 1, 128>}, {pipeline_mode = #tpu.pipeline_mode<synchronous>, transform_indices = @transform_5, window_bounds = array<i64: 4, 128>}, {pipeline_mode = #tpu.pipeline_mode<synchronous>, transform_indices = @transform_6, window_bounds = array<i64: 4, 1>}, {transform_indices = @transform_7, window_bounds = array<i64: 4, 128>}]} {
    %c0 = arith.constant 0 : index
    %c0_0 = arith.constant 0 : index
    %0 = vector.load %arg1[%c0, %c0_0] : memref<128x128xbf16, #tpu.memory_space<vmem>>, vector<128x128xbf16>
    %c0_1 = arith.constant 0 : index
    %c0_2 = arith.constant 0 : index
    %1 = vector.load %arg2[%c0_1, %c0_2] : memref<128x256xbf16, #tpu.memory_space<vmem>>, vector<128x256xbf16>
    %cst = arith.constant dense<0.000000e+00> : vector<128x256xf32>
    %2 = tpu.matmul %0, %1, %cst {dimension_numbers = #tpu.dot_dimension_numbers<[1], [0], [0], [1], [0, 0, 1, 1], [], []>} : vector<128x128xbf16>, vector<128x256xbf16>, vector<128x256xf32> -> vector<128x256xf32>
    %c0_3 = arith.constant 0 : index
    %c0_4 = arith.constant 0 : index
    %3 = vector.load %arg3[%c0_3, %c0_4] : memref<1x256xf32, #tpu.memory_space<vmem>>, vector<1x256xf32>
    %4 = vector.broadcast %3 : vector<1x256xf32> to vector<128x256xf32>
    %5 = arith.addf %2, %4 : vector<128x256xf32>
    %cst_5 = arith.constant 0.000000e+00 : f32
    %6 = vector.broadcast %cst_5 : f32 to vector<128x256xf32>
    %7 = arith.maximumf %5, %6 : vector<128x256xf32>
    %8 = arith.truncf %7 : vector<128x256xf32> to vector<128x256xbf16>
    %c0_6 = arith.constant 0 : index
    %c0_7 = arith.constant 0 : index
    %9 = vector.load %arg4[%c0_6, %c0_7] : memref<256x128xbf16, #tpu.memory_space<vmem>>, vector<256x128xbf16>
    %cst_8 = arith.constant dense<0.000000e+00> : vector<128x128xf32>
    %10 = tpu.matmul %8, %9, %cst_8 {dimension_numbers = #tpu.dot_dimension_numbers<[1], [0], [0], [1], [0, 0, 1, 1], [], []>} : vector<128x256xbf16>, vector<256x128xbf16>, vector<128x128xf32> -> vector<128x128xf32>
    %c0_9 = arith.constant 0 : index
    %c0_10 = arith.constant 0 : index
    %11 = vector.load %arg5[%c0_9, %c0_10] : memref<1x128xf32, #tpu.memory_space<vmem>>, vector<1x128xf32>
    %12 = vector.broadcast %11 : vector<1x128xf32> to vector<128x128xf32>
    %13 = arith.addf %10, %12 : vector<128x128xf32>
    %cst_11 = arith.constant 0.000000e+00 : f32
    %14 = vector.broadcast %cst_11 : f32 to vector<128x128xf32>
    %15 = arith.maximumf %13, %14 : vector<128x128xf32>
    %16 = arith.truncf %15 : vector<128x128xf32> to vector<128x128xbf16>
    %c0_12 = arith.constant 0 : index
    %c0_13 = arith.constant 0 : index
    %17 = vector.load %arg6[%c0_12, %c0_13] : memref<4x128xbf16, #tpu.memory_space<vmem>>, vector<4x128xbf16>
    %cst_14 = arith.constant dense<0.000000e+00> : vector<4x128xf32>
    %18 = tpu.matmul %17, %16, %cst_14 {dimension_numbers = #tpu.dot_dimension_numbers<[1], [1], [0], [0], [0, 0, 1, 0], [], []>} : vector<4x128xbf16>, vector<128x128xbf16>, vector<4x128xf32> -> vector<4x128xf32>
    %c0_15 = arith.constant 0 : index
    %c0_16 = arith.constant 0 : index
    %19 = vector.load %arg7[%c0_15, %c0_16] : memref<4x1xf32, #tpu.memory_space<vmem>>, vector<4x1xf32>
    %20 = vector.broadcast %19 : vector<4x1xf32> to vector<4x128xf32>
    %21 = arith.addf %18, %20 : vector<4x128xf32>
    %22 = arith.negf %21 : vector<4x128xf32>
    %23 = math.exp %22 : vector<4x128xf32>
    %cst_17 = arith.constant 1.000000e+00 : f32
    %24 = vector.broadcast %cst_17 : f32 to vector<4x128xf32>
    %25 = arith.addf %24, %23 : vector<4x128xf32>
    %26 = arith.divf %24, %25 : vector<4x128xf32>
    %c0_18 = arith.constant 0 : index
    %c0_19 = arith.constant 0 : index
    %27 = vector.load %arg8[%c0_18, %c0_19] : memref<4x128xf32, #tpu.memory_space<vmem>>, vector<4x128xf32>
    tpu.vector_store %arg8[%c0_18, %c0_19], %26 {strides = array<i32>} : memref<4x128xf32, #tpu.memory_space<vmem>>, vector<4x128xf32>,
    return
  }
  func.func @transform_0(%arg0: i32) -> (i32, i32) {
    %c0_i32 = arith.constant 0 : i32
    %c0_i32_0 = arith.constant 0 : i32
    return %arg0, %c0_i32 : i32, i32
  }
  func.func @transform_1(%arg0: i32) -> (i32, i32) {
    %c0_i32 = arith.constant 0 : i32
    %c0_i32_0 = arith.constant 0 : i32
    %c0_i32_1 = arith.constant 0 : i32
    return %c0_i32, %c0_i32_0 : i32, i32
  }
  func.func @transform_2(%arg0: i32) -> (i32, i32) {
    %c0_i32 = arith.constant 0 : i32
    %c0_i32_0 = arith.constant 0 : i32
    %c0_i32_1 = arith.constant 0 : i32
    return %c0_i32, %c0_i32_0 : i32, i32
  }
  func.func @transform_3(%arg0: i32) -> (i32, i32) {
    %c0_i32 = arith.constant 0 : i32
    %c0_i32_0 = arith.constant 0 : i32
    %c0_i32_1 = arith.constant 0 : i32
    return %c0_i32, %c0_i32_0 : i32, i32
  }
  func.func @transform_4(%arg0: i32) -> (i32, i32) {
    %c0_i32 = arith.constant 0 : i32
    %c0_i32_0 = arith.constant 0 : i32
    %c0_i32_1 = arith.constant 0 : i32
    return %c0_i32, %c0_i32_0 : i32, i32
  }
  func.func @transform_5(%arg0: i32) -> (i32, i32) {
    %c0_i32 = arith.constant 0 : i32
    %c0_i32_0 = arith.constant 0 : i32
    %c0_i32_1 = arith.constant 0 : i32
    return %c0_i32, %c0_i32_0 : i32, i32
  }
  func.func @transform_6(%arg0: i32) -> (i32, i32) {
    %c0_i32 = arith.constant 0 : i32
    %c0_i32_0 = arith.constant 0 : i32
    %c0_i32_1 = arith.constant 0 : i32
    return %c0_i32, %c0_i32_0 : i32, i32
  }
  func.func @transform_7(%arg0: i32) -> (i32, i32) {
    %c0_i32 = arith.constant 0 : i32
    %c0_i32_0 = arith.constant 0 : i32
    return %c0_i32, %arg0 : i32, i32
  }
}

</mosaic_0001>

<llo_original>
// kernel: tpu_custom_call.1
$region0: #{tpu_custom_call.1}
  #allocation0 [shape = 'u32[]', space=smem, size = 0x4, offset = 0x4, fixed_abs, tag = 'smem constant byte address 0x4 - core index']
  #allocation1 [shape = 'u32[144,128]{1,0:T(1,128)}', space=vmem, size = 0x12000, scoped, tag = 'internal scratch']
  %s0 = inlined_call_operand.hbm [shape: bf16[128,128], index: 0, kind: input, shape index: {}]
  %s1 = inlined_call_operand.hbm [shape: bf16[128,256], index: 1, kind: input, shape index: {}]
  %s2 = inlined_call_operand.vmem [shape: f32[1,256], index: 2, kind: input, shape index: {}]
  %s3 = inlined_call_operand.hbm [shape: bf16[256,128], index: 3, kind: input, shape index: {}]
  %s4 = inlined_call_operand.vmem [shape: f32[1,128], index: 4, kind: input, shape index: {}]
  %s5 = inlined_call_operand.vmem [shape: bf16[4,128], index: 5, kind: input, shape index: {}]
  %s6 = inlined_call_operand.vmem [shape: f32[4,1], index: 6, kind: input, shape index: {}]
  %s7 = inlined_call_operand.hbm [shape: f32[4,128], index: 7, kind: output, shape index: {}]
  %s8 = sld [smem:[#allocation0]]
  $region50: #{tpu_custom_call.1} parent=0
    _
  %s10 = ssub.s32 1, %s8
  %s11 = scalar_select 0, %s10, %s8
  $region1: #{tpu_custom_call.1} parent=0
    #allocation2 [shape = 'u8[32768]{0}', space=vmem, size = 0x8000, scoped, tag = 'input window, operand 0, single buffered']
    #allocation3 [shape = 's32[1]{0}', space=sflag, size = 0x4, scoped, tag = 'scoped memory for tpu_custom_call.1']
    #allocation4 [shape = 's32[1]{0}', space=sflag, size = 0x4, scoped, tag = 'scoped memory for tpu_custom_call.1']
    #allocation5 [shape = 'u8[65536]{0}', space=vmem, size = 0x10000, scoped, tag = 'input window, operand 1, single buffered']
    #allocation6 [shape = 's32[1]{0}', space=sflag, size = 0x4, scoped, tag = 'scoped memory for tpu_custom_call.1']
    #allocation7 [shape = 'u8[65536]{0}', space=vmem, size = 0x10000, scoped, tag = 'input window, operand 3, single buffered']
    #allocation8 [shape = 'u8[2048]{0}', space=vmem, size = 0x800, scoped, tag = 'output window, operand 0, single buffered']
    %12 = vsyncpa [#allocation3], 0
    %13 = vsyncpa [#allocation6], 0
    %14 = vsyncpa [#allocation4], 0
    // Predicated region
    $region2: #{tpu_custom_call.1} parent=1 // pred_check
      _
    $region3: #{tpu_custom_call.1} parent=1 // pred_check_branch
      %16 = sbr.rel (0) target = $region5
    $region4: #{tpu_custom_call.1} parent=1 // pred_region
      %s18 = ssub.s32 1024, 1024
      %19 = vsyncadd [#allocation3], %s18
      %s20 = sshll.u32 [#allocation2], 4
      %s21 = int_to_ptr.vmem [resolvable:$true] %s20
      %26 = dma.hbm_to_vmem [thread:$0]  %s0, 1024, %s21, [#allocation3], 64, 64, 4
    $region5: #{tpu_custom_call.1} parent=1 // pred_fallthru
      _
    // Predicated region
    $region6: #{tpu_custom_call.1} parent=1 // pred_check
      _
    $region7: #{tpu_custom_call.1} parent=1 // pred_check_branch
      %28 = sbr.rel (0) target = $region9
    $region8: #{tpu_custom_call.1} parent=1 // pred_region
      %s30 = ssub.s32 2048, 2048
      %31 = vsyncadd [#allocation6], %s30
      %s32 = sshll.u32 [#allocation5], 4
      %s33 = int_to_ptr.vmem [resolvable:$true] %s32
      %38 = dma.hbm_to_vmem [thread:$0]  %s1, 2048, %s33, [#allocation6], 128, 128, 8
    $region9: #{tpu_custom_call.1} parent=1 // pred_fallthru
      _
    // Predicated region
    $region10: #{tpu_custom_call.1} parent=1 // pred_check
      _
    $region11: #{tpu_custom_call.1} parent=1 // pred_check_branch
      %40 = sbr.rel (0) target = $region13
    $region12: #{tpu_custom_call.1} parent=1 // pred_region
      _
    $region13: #{tpu_custom_call.1} parent=1 // pred_fallthru
      _
    // Predicated region
    $region14: #{tpu_custom_call.1} parent=1 // pred_check
      _
    $region15: #{tpu_custom_call.1} parent=1 // pred_check_branch
      %42 = sbr.rel (0) target = $region17
    $region16: #{tpu_custom_call.1} parent=1 // pred_region
      %s44 = ssub.s32 2048, 2048
      %45 = vsyncadd [#allocation6], %s44
      %s46 = sshll.u32 [#allocation7], 4
      %s47 = int_to_ptr.vmem [resolvable:$true] %s46
      %52 = dma.hbm_to_vmem [thread:$0]  %s3, 2048, %s47, [#allocation6], 64, 64, 4
    $region17: #{tpu_custom_call.1} parent=1 // pred_fallthru
      _
    // Predicated region
    $region18: #{tpu_custom_call.1} parent=1 // pred_check
      _
    $region19: #{tpu_custom_call.1} parent=1 // pred_check_branch
      %54 = sbr.rel (0) target = $region21
    $region20: #{tpu_custom_call.1} parent=1 // pred_region
      _
    $region21: #{tpu_custom_call.1} parent=1 // pred_fallthru
      _
    // Predicated region
    $region22: #{tpu_custom_call.1} parent=1 // pred_check
      _
    $region23: #{tpu_custom_call.1} parent=1 // pred_check_branch
      %56 = sbr.rel (0) target = $region25
    $region24: #{tpu_custom_call.1} parent=1 // pred_region
      _
    $region25: #{tpu_custom_call.1} parent=1 // pred_fallthru
      _
    // Predicated region
    $region26: #{tpu_custom_call.1} parent=1 // pred_check
      _
    $region27: #{tpu_custom_call.1} parent=1 // pred_check_branch
      %58 = sbr.rel (0) target = $region29
    $region28: #{tpu_custom_call.1} parent=1 // pred_region
      _
    $region29: #{tpu_custom_call.1} parent=1 // pred_fallthru
      _
    // Predicated region
    $region30: #{tpu_custom_call.1} parent=1 // pred_check
      _
    $region31: #{tpu_custom_call.1} parent=1 // pred_check_branch
      %60 = sbr.rel (0) target = $region33
    $region32: #{tpu_custom_call.1} parent=1 // pred_region
      %61 = dma.done [#allocation3], 1024
    $region33: #{tpu_custom_call.1} parent=1 // pred_fallthru
      _
    // Predicated region
    $region34: #{tpu_custom_call.1} parent=1 // pred_check
      _
    $region35: #{tpu_custom_call.1} parent=1 // pred_check_branch
      %63 = sbr.rel (0) target = $region37
    $region36: #{tpu_custom_call.1} parent=1 // pred_region
      %64 = dma.done [#allocation6], 2048
    $region37: #{tpu_custom_call.1} parent=1 // pred_fallthru
      _
    // Predicated region
    $region38: #{tpu_custom_call.1} parent=1 // pred_check
      _
    $region39: #{tpu_custom_call.1} parent=1 // pred_check_branch
      %66 = sbr.rel (0) target = $region41
    $region40: #{tpu_custom_call.1} parent=1 // pred_region
      %67 = dma.done [#allocation6], 2048
    $region41: #{tpu_custom_call.1} parent=1 // pred_fallthru
      _
    %v69 = vld [vmem:[#allocation2] sm:$0xf]
    %v70 = vld [vmem:[#allocation2 + $0x4] sm:$0xf]
    %v71 = vld [vmem:[#allocation2 + $0x8] sm:$0xf]
    %v72 = vld [vmem:[#allocation2 + $0xc] sm:$0xf]
    %v73 = vld [vmem:[#allocation2 + $0x10] sm:$0xf]
    %v74 = vld [vmem:[#allocation2 + $0x14] sm:$0xf]
    %v75 = vld [vmem:[#allocation2 + $0x18] sm:$0xf]
    %v76 = vld [vmem:[#allocation2 + $0x1c] sm:$0xf]
    %v77 = vld [vmem:[#allocation2 + $0x20] sm:$0xf]
    %v78 = vld [vmem:[#allocation2 + $0x24] sm:$0xf]
    %v79 = vld [vmem:[#allocation2 + $0x28] sm:$0xf]
    %v80 = vld [vmem:[#allocation2 + $0x2c] sm:$0xf]
    %v81 = vld [vmem:[#allocation2 + $0x30] sm:$0xf]
    %v82 = vld [vmem:[#allocation2 + $0x34] sm:$0xf]
    %v83 = vld [vmem:[#allocation2 + $0x38] sm:$0xf]
    %v84 = vld [vmem:[#allocation2 + $0x3c] sm:$0xf]
    %v85 = vld [vmem:[#allocation5] sm:$0xff]
    %v86 = vld [vmem:[#allocation5 + $0x8] sm:$0xff]
    %v87 = vld [vmem:[#allocation5 + $0x10] sm:$0xff]
    %v88 = vld [vmem:[#allocation5 + $0x18] sm:$0xff]
    %v89 = vld [vmem:[#allocation5 + $0x20] sm:$0xff]
    %v90 = vld [vmem:[#allocation5 + $0x28] sm:$0xff]
    %v91 = vld [vmem:[#allocation5 + $0x30] sm:$0xff]
    %v92 = vld [vmem:[#allocation5 + $0x38] sm:$0xff]
    %v93 = vld [vmem:[#allocation5 + $0x40] sm:$0xff]
    %v94 = vld [vmem:[#allocation5 + $0x48] sm:$0xff]
    %v95 = vld [vmem:[#allocation5 + $0x50] sm:$0xff]
    %v96 = vld [vmem:[#allocation5 + $0x58] sm:$0xff]
    %v97 = vld [vmem:[#allocation5 + $0x60] sm:$0xff]
    %v98 = vld [vmem:[#allocation5 + $0x68] sm:$0xff]
    %v99 = vld [vmem:[#allocation5 + $0x70] sm:$0xff]
    %v100 = vld [vmem:[#allocation5 + $0x78] sm:$0xff]
    %v101 = vld [vmem:[%s2] sm:$0x3]
    %v103 = vlaneseq
    %v104 = vshrl.u32 %v103, 7
    %v105 = vsub.s32 0, %v104
    %v106 = vrot.slane %v101, %v105
    %v107 = vlaneseq
    %v108 = vshrl.u32 %v107, 7
    %v109 = vsub.s32 1, %v108
    %v110 = vrot.slane %v101, %v109
    %v129 = vunpack.c.l.b16 %v69
    %v130 = vunpack.c.l.b16 %v70
    %v131 = vunpack.c.l.b16 %v71
    %v132 = vunpack.c.l.b16 %v72
    %v133 = vunpack.c.l.b16 %v73
    %v134 = vunpack.c.l.b16 %v74
    %v135 = vunpack.c.l.b16 %v75
    %v136 = vunpack.c.l.b16 %v76
    %v137 = vunpack.c.l.b16 %v77
    %v138 = vunpack.c.l.b16 %v78
    %v139 = vunpack.c.l.b16 %v79
    %v140 = vunpack.c.l.b16 %v80
    %v141 = vunpack.c.l.b16 %v81
    %v142 = vunpack.c.l.b16 %v82
    %v143 = vunpack.c.l.b16 %v83
    %v144 = vunpack.c.l.b16 %v84
    %v145 = vpack.c.b16 %v130, %v129
    %v146 = vpack.c.b16 %v132, %v131
    %v147 = vpack.c.b16 %v134, %v133
    %v148 = vpack.c.b16 %v136, %v135
    %v149 = vpack.c.b16 %v138, %v137
    %v150 = vpack.c.b16 %v140, %v139
    %v151 = vpack.c.b16 %v142, %v141
    %v152 = vpack.c.b16 %v144, %v143
    %v177 = vunpack.c.l.b16 %v85
    %v178 = vunpack.c.h.b16 %v85
    %v179 = vunpack.c.l.b16 %v86
    %v180 = vunpack.c.h.b16 %v86
    %v181 = vunpack.c.l.b16 %v87
    %v182 = vunpack.c.h.b16 %v87
    %v183 = vunpack.c.l.b16 %v88
    %v184 = vunpack.c.h.b16 %v88
    %v185 = vunpack.c.l.b16 %v89
    %v186 = vunpack.c.h.b16 %v89
    %v187 = vunpack.c.l.b16 %v90
    %v188 = vunpack.c.h.b16 %v90
    %v189 = vunpack.c.l.b16 %v91
    %v190 = vunpack.c.h.b16 %v91
    %v191 = vunpack.c.l.b16 %v92
    %v192 = vunpack.c.h.b16 %v92
    %v193 = vunpack.c.l.b16 %v93
    %v194 = vunpack.c.h.b16 %v93
    %v195 = vunpack.c.l.b16 %v94
    %v196 = vunpack.c.h.b16 %v94
    %v197 = vunpack.c.l.b16 %v95
    %v198 = vunpack.c.h.b16 %v95
    %v199 = vunpack.c.l.b16 %v96
    %v200 = vunpack.c.h.b16 %v96
    %v201 = vunpack.c.l.b16 %v97
    %v202 = vunpack.c.h.b16 %v97
    %v203 = vunpack.c.l.b16 %v98
    %v204 = vunpack.c.h.b16 %v98
    %v205 = vunpack.c.l.b16 %v99
    %v206 = vunpack.c.h.b16 %v99
    %v207 = vunpack.c.l.b16 %v100
    %v208 = vunpack.c.h.b16 %v100
    %v209 = vpack.c.b16 %v179, %v177
    %v210 = vpack.c.b16 %v180, %v178
    %v211 = vpack.c.b16 %v183, %v181
    %v212 = vpack.c.b16 %v184, %v182
    %v213 = vpack.c.b16 %v187, %v185
    %v214 = vpack.c.b16 %v188, %v186
    %v215 = vpack.c.b16 %v191, %v189
    %v216 = vpack.c.b16 %v192, %v190
    %v217 = vpack.c.b16 %v195, %v193
    %v218 = vpack.c.b16 %v196, %v194
    %v219 = vpack.c.b16 %v199, %v197
    %v220 = vpack.c.b16 %v200, %v198
    %v221 = vpack.c.b16 %v203, %v201
    %v222 = vpack.c.b16 %v204, %v202
    %v223 = vpack.c.b16 %v207, %v205
    %v224 = vpack.c.b16 %v208, %v206
    %241 = vmatprep.subr.bf16.mxu0 %v210
    %242 = vmatpush1.bf16.msra.mxu0 %v209
    %243 = vmatprep.subr.bf16.mxu0 %v212
    %244 = vmatpush1.bf16.msra.mxu0 %v211
    %245 = vmatprep.subr.bf16.mxu0 %v214
    %246 = vmatpush1.bf16.msra.mxu0 %v213
    %247 = vmatprep.subr.bf16.mxu0 %v216
    %248 = vmatpush1.bf16.msra.mxu0 %v215
    %249 = vmatprep.subr.bf16.mxu0 %v218
    %250 = vmatpush1.bf16.msra.mxu0 %v217
    %251 = vmatprep.subr.bf16.mxu0 %v220
    %252 = vmatpush1.bf16.msra.mxu0 %v219
    %253 = vmatprep.subr.bf16.mxu0 %v222
    %254 = vmatpush1.bf16.msra.mxu0 %v221
    %255 = vmatprep.subr.bf16.mxu0 %v224
    %256 = vmatpush1.bf16.msra.mxu0 %v223
    %257 = vmatprep.subr.bf16.mxu0 0
    %258 = vmatpush1.bf16.msra.mxu0 0
    %259 = vmatprep.subr.bf16.mxu0 0
    %260 = vmatpush1.bf16.msra.mxu0 0
    %261 = vmatprep.subr.bf16.mxu0 0
    %262 = vmatpush1.bf16.msra.mxu0 0
    %263 = vmatprep.subr.bf16.mxu0 0
    %264 = vmatpush1.bf16.msra.mxu0 0
    %265 = vmatprep.subr.bf16.mxu0 0
    %266 = vmatpush1.bf16.msra.mxu0 0
    %267 = vmatprep.subr.bf16.mxu0 0
    %268 = vmatpush1.bf16.msra.mxu0 0
    %269 = vmatprep.subr.bf16.mxu0 0
    %270 = vmatpush1.bf16.msra.mxu0 0
    %271 = vmatprep.subr.bf16.mxu0 0
    %272 = vmatpush1.bf16.msra.mxu0 0
    %273 = vmatprep.mubr.bf16.mxu0 0
    %274 = vmatmul.mubr.bf16.gmra.mrb[0].mxu0 %v145
    %v275 = vpop.f32.mrb[0].mxu0
    %v276 = vadd.f32 %v106, %v275
    %v277 = vpop.f32.mrb[0].mxu0
    %v278 = vadd.f32 %v110, %v277
    %v279 = vpop.f32.mrb[0].mxu0
    %v280 = vadd.f32 %v106, %v279
    %v281 = vpop.f32.mrb[0].mxu0
    %v282 = vadd.f32 %v110, %v281
    %283 = vmatprep.mubr.bf16.mxu0 0
    %284 = vmatmul.mubr.bf16.gmra.mrb[0].mxu0 %v146
    %v285 = vpop.f32.mrb[0].mxu0
    %v286 = vadd.f32 %v106, %v285
    %v287 = vpop.f32.mrb[0].mxu0
    %v288 = vadd.f32 %v110, %v287
    %v289 = vpop.f32.mrb[0].mxu0
    %v290 = vadd.f32 %v106, %v289
    %v291 = vpop.f32.mrb[0].mxu0
    %v292 = vadd.f32 %v110, %v291
    %293 = vmatprep.mubr.bf16.mxu0 0
    %294 = vmatmul.mubr.bf16.gmra.mrb[0].mxu0 %v147
    %v295 = vpop.f32.mrb[0].mxu0
    %v296 = vadd.f32 %v106, %v295
    %v297 = vpop.f32.mrb[0].mxu0
    %v298 = vadd.f32 %v110, %v297
    %v299 = vpop.f32.mrb[0].mxu0
    %v300 = vadd.f32 %v106, %v299
    %v301 = vpop.f32.mrb[0].mxu0
    %v302 = vadd.f32 %v110, %v301
    %303 = vmatprep.mubr.bf16.mxu0 0
    %304 = vmatmul.mubr.bf16.gmra.mrb[0].mxu0 %v148
    %v305 = vpop.f32.mrb[0].mxu0
    %v306 = vadd.f32 %v106, %v305
    %v307 = vpop.f32.mrb[0].mxu0
    %v308 = vadd.f32 %v110, %v307
    %v309 = vpop.f32.mrb[0].mxu0
    %v310 = vadd.f32 %v106, %v309
    %v311 = vpop.f32.mrb[0].mxu0
    %v312 = vadd.f32 %v110, %v311
    %313 = vmatprep.mubr.bf16.mxu0 0
    %314 = vmatmul.mubr.bf16.gmra.mrb[0].mxu0 %v149
    %v315 = vpop.f32.mrb[0].mxu0
    %v316 = vadd.f32 %v106, %v315
    %v317 = vpop.f32.mrb[0].mxu0
    %v318 = vadd.f32 %v110, %v317
    %v319 = vpop.f32.mrb[0].mxu0
    %v320 = vadd.f32 %v106, %v319
    %v321 = vpop.f32.mrb[0].mxu0
    %v322 = vadd.f32 %v110, %v321
    %323 = vmatprep.mubr.bf16.mxu0 0
    %324 = vmatmul.mubr.bf16.gmra.mrb[0].mxu0 %v150
    %v325 = vpop.f32.mrb[0].mxu0
    %v326 = vadd.f32 %v106, %v325
    %v327 = vpop.f32.mrb[0].mxu0
    %v328 = vadd.f32 %v110, %v327
    %v329 = vpop.f32.mrb[0].mxu0
    %v330 = vadd.f32 %v106, %v329
    %v331 = vpop.f32.mrb[0].mxu0
    %v332 = vadd.f32 %v110, %v331
    %333 = vmatprep.mubr.bf16.mxu0 0
    %334 = vmatmul.mubr.bf16.gmra.mrb[0].mxu0 %v151
    %v335 = vpop.f32.mrb[0].mxu0
    %v336 = vadd.f32 %v106, %v335
    %v337 = vpop.f32.mrb[0].mxu0
    %v338 = vadd.f32 %v110, %v337
    %v339 = vpop.f32.mrb[0].mxu0
    %v340 = vadd.f32 %v106, %v339
    %v341 = vpop.f32.mrb[0].mxu0
    %v342 = vadd.f32 %v110, %v341
    %343 = vmatprep.mubr.bf16.mxu0 0
    %344 = vmatmul.mubr.bf16.gmra.mrb[0].mxu0 %v152
    %v345 = vpop.f32.mrb[0].mxu0
    %v346 = vadd.f32 %v106, %v345
    %v347 = vpop.f32.mrb[0].mxu0
    %v348 = vadd.f32 %v110, %v347
    %v349 = vpop.f32.mrb[0].mxu0
    %v350 = vadd.f32 %v106, %v349
    %v351 = vpop.f32.mrb[0].mxu0
    %v352 = vadd.f32 %v110, %v351
    %353 = vdwg.mxu0
    %v354 = vmax.f32 %v276, 0.0
    %v355 = vmax.f32 %v278, 0.0
    %v356 = vmax.f32 %v280, 0.0
    %v357 = vmax.f32 %v282, 0.0
    %v358 = vmax.f32 %v286, 0.0
    %v359 = vmax.f32 %v288, 0.0
    %v360 = vmax.f32 %v290, 0.0
    %v361 = vmax.f32 %v292, 0.0
    %v362 = vmax.f32 %v296, 0.0
    %v363 = vmax.f32 %v298, 0.0
    %v364 = vmax.f32 %v300, 0.0
    %v365 = vmax.f32 %v302, 0.0
    %v366 = vmax.f32 %v306, 0.0
    %v367 = vmax.f32 %v308, 0.0
    %v368 = vmax.f32 %v310, 0.0
    %v369 = vmax.f32 %v312, 0.0
    %v370 = vmax.f32 %v316, 0.0
    %v371 = vmax.f32 %v318, 0.0
    %v372 = vmax.f32 %v320, 0.0
    %v373 = vmax.f32 %v322, 0.0
    %v374 = vmax.f32 %v326, 0.0
    %v375 = vmax.f32 %v328, 0.0
    %v376 = vmax.f32 %v330, 0.0
    %v377 = vmax.f32 %v332, 0.0
    %v378 = vmax.f32 %v336, 0.0
    %v379 = vmax.f32 %v338, 0.0
    %v380 = vmax.f32 %v340, 0.0
    %v381 = vmax.f32 %v342, 0.0
    %v382 = vmax.f32 %v346, 0.0
    %v383 = vmax.f32 %v348, 0.0
    %v384 = vmax.f32 %v350, 0.0
    %v385 = vmax.f32 %v352, 0.0
    %v386 = vpack.c.bf16 %v356, %v354
    %v387 = vpack.c.bf16 %v357, %v355
    %v388 = vpack.c.bf16 %v360, %v358
    %v389 = vpack.c.bf16 %v361, %v359
    %v390 = vpack.c.bf16 %v364, %v362
    %v391 = vpack.c.bf16 %v365, %v363
    %v392 = vpack.c.bf16 %v368, %v366
    %v393 = vpack.c.bf16 %v369, %v367
    %v394 = vpack.c.bf16 %v372, %v370
    %v395 = vpack.c.bf16 %v373, %v371
    %v396 = vpack.c.bf16 %v376, %v374
    %v397 = vpack.c.bf16 %v377, %v375
    %v398 = vpack.c.bf16 %v380, %v378
    %v399 = vpack.c.bf16 %v381, %v379
    %v400 = vpack.c.bf16 %v384, %v382
    %v401 = vpack.c.bf16 %v385, %v383
    %v402 = vld [vmem:[#allocation7] sm:$0xf]
    %v403 = vld [vmem:[#allocation7 + $0x4] sm:$0xf]
    %v404 = vld [vmem:[#allocation7 + $0x8] sm:$0xf]
    %v405 = vld [vmem:[#allocation7 + $0xc] sm:$0xf]
    %v406 = vld [vmem:[#allocation7 + $0x10] sm:$0xf]
    %v407 = vld [vmem:[#allocation7 + $0x14] sm:$0xf]
    %v408 = vld [vmem:[#allocation7 + $0x18] sm:$0xf]
    %v409 = vld [vmem:[#allocation7 + $0x1c] sm:$0xf]
    %v410 = vld [vmem:[#allocation7 + $0x20] sm:$0xf]
    %v411 = vld [vmem:[#allocation7 + $0x24] sm:$0xf]
    %v412 = vld [vmem:[#allocation7 + $0x28] sm:$0xf]
    %v413 = vld [vmem:[#allocation7 + $0x2c] sm:$0xf]
    %v414 = vld [vmem:[#allocation7 + $0x30] sm:$0xf]
    %v415 = vld [vmem:[#allocation7 + $0x34] sm:$0xf]
    %v416 = vld [vmem:[#allocation7 + $0x38] sm:$0xf]
    %v417 = vld [vmem:[#allocation7 + $0x3c] sm:$0xf]
    %v418 = vld [vmem:[#allocation7 + $0x40] sm:$0xf]
    %v419 = vld [vmem:[#allocation7 + $0x44] sm:$0xf]
    %v420 = vld [vmem:[#allocation7 + $0x48] sm:$0xf]
    %v421 = vld [vmem:[#allocation7 + $0x4c] sm:$0xf]
    %v422 = vld [vmem:[#allocation7 + $0x50] sm:$0xf]
    %v423 = vld [vmem:[#allocation7 + $0x54] sm:$0xf]
    %v424 = vld [vmem:[#allocation7 + $0x58] sm:$0xf]
    %v425 = vld [vmem:[#allocation7 + $0x5c] sm:$0xf]
    %v426 = vld [vmem:[#allocation7 + $0x60] sm:$0xf]
    %v427 = vld [vmem:[#allocation7 + $0x64] sm:$0xf]
    %v428 = vld [vmem:[#allocation7 + $0x68] sm:$0xf]
    %v429 = vld [vmem:[#allocation7 + $0x6c] sm:$0xf]
    %v430 = vld [vmem:[#allocation7 + $0x70] sm:$0xf]
    %v431 = vld [vmem:[#allocation7 + $0x74] sm:$0xf]
    %v432 = vld [vmem:[#allocation7 + $0x78] sm:$0xf]
    %v433 = vld [vmem:[#allocation7 + $0x7c] sm:$0xf]
    %v434 = vld [vmem:[%s4] sm:$0x1]
    %v436 = vlaneseq
    %v437 = vshrl.u32 %v436, 7
    %v438 = vsub.s32 0, %v437
    %v439 = vrot.slane %v434, %v438
    %v473 = vunpack.c.l.b16 %v402
    %v474 = vunpack.c.l.b16 %v403
    %v475 = vunpack.c.l.b16 %v404
    %v476 = vunpack.c.l.b16 %v405
    %v477 = vunpack.c.l.b16 %v406
    %v478 = vunpack.c.l.b16 %v407
    %v479 = vunpack.c.l.b16 %v408
    %v480 = vunpack.c.l.b16 %v409
    %v481 = vunpack.c.l.b16 %v410
    %v482 = vunpack.c.l.b16 %v411
    %v483 = vunpack.c.l.b16 %v412
    %v484 = vunpack.c.l.b16 %v413
    %v485 = vunpack.c.l.b16 %v414
    %v486 = vunpack.c.l.b16 %v415
    %v487 = vunpack.c.l.b16 %v416
    %v488 = vunpack.c.l.b16 %v417
    %v489 = vunpack.c.l.b16 %v418
    %v490 = vunpack.c.l.b16 %v419
    %v491 = vunpack.c.l.b16 %v420
    %v492 = vunpack.c.l.b16 %v421
    %v493 = vunpack.c.l.b16 %v422
    %v494 = vunpack.c.l.b16 %v423
    %v495 = vunpack.c.l.b16 %v424
    %v496 = vunpack.c.l.b16 %v425
    %v497 = vunpack.c.l.b16 %v426
    %v498 = vunpack.c.l.b16 %v427
    %v499 = vunpack.c.l.b16 %v428
    %v500 = vunpack.c.l.b16 %v429
    %v501 = vunpack.c.l.b16 %v430
    %v502 = vunpack.c.l.b16 %v431
    %v503 = vunpack.c.l.b16 %v432
    %v504 = vunpack.c.l.b16 %v433
    %v505 = vpack.c.b16 %v474, %v473
    %v506 = vpack.c.b16 %v476, %v475
    %v507 = vpack.c.b16 %v478, %v477
    %v508 = vpack.c.b16 %v480, %v479
    %v509 = vpack.c.b16 %v482, %v481
    %v510 = vpack.c.b16 %v484, %v483
    %v511 = vpack.c.b16 %v486, %v485
    %v512 = vpack.c.b16 %v488, %v487
    %v513 = vpack.c.b16 %v490, %v489
    %v514 = vpack.c.b16 %v492, %v491
    %v515 = vpack.c.b16 %v494, %v493
    %v516 = vpack.c.b16 %v496, %v495
    %v517 = vpack.c.b16 %v498, %v497
    %v518 = vpack.c.b16 %v500, %v499
    %v519 = vpack.c.b16 %v502, %v501
    %v520 = vpack.c.b16 %v504, %v503
    %537 = vmatprep.subr.bf16.mxu0 0
    %538 = vmatpush1.bf16.msra.mxu0 %v505
    %539 = vmatprep.subr.bf16.mxu0 0
    %540 = vmatpush1.bf16.msra.mxu0 %v506
    %541 = vmatprep.subr.bf16.mxu0 0
    %542 = vmatpush1.bf16.msra.mxu0 %v507
    %543 = vmatprep.subr.bf16.mxu0 0
    %544 = vmatpush1.bf16.msra.mxu0 %v508
    %545 = vmatprep.subr.bf16.mxu0 0
    %546 = vmatpush1.bf16.msra.mxu0 %v509
    %547 = vmatprep.subr.bf16.mxu0 0
    %548 = vmatpush1.bf16.msra.mxu0 %v510
    %549 = vmatprep.subr.bf16.mxu0 0
    %550 = vmatpush1.bf16.msra.mxu0 %v511
    %551 = vmatprep.subr.bf16.mxu0 0
    %552 = vmatpush1.bf16.msra.mxu0 %v512
    %553 = vmatprep.subr.bf16.mxu0 0
    %554 = vmatpush1.bf16.msra.mxu0 %v513
    %555 = vmatprep.subr.bf16.mxu0 0
    %556 = vmatpush1.bf16.msra.mxu0 %v514
    %557 = vmatprep.subr.bf16.mxu0 0
    %558 = vmatpush1.bf16.msra.mxu0 %v515
    %559 = vmatprep.subr.bf16.mxu0 0
    %560 = vmatpush1.bf16.msra.mxu0 %v516
    %561 = vmatprep.subr.bf16.mxu0 0
    %562 = vmatpush1.bf16.msra.mxu0 %v517
    %563 = vmatprep.subr.bf16.mxu0 0
    %564 = vmatpush1.bf16.msra.mxu0 %v518
    %565 = vmatprep.subr.bf16.mxu0 0
    %566 = vmatpush1.bf16.msra.mxu0 %v519
    %567 = vmatprep.subr.bf16.mxu0 0
    %568 = vmatpush1.bf16.msra.mxu0 %v520
    %569 = vmatprep.mubr.bf16.mxu0 %v387
    %570 = vmatmul.mubr.bf16.gmra.mrb[0].mxu0 %v386
    %v571 = vpop.f32.mrb[0].mxu0
    %v572 = vadd.f32 %v439, %v571
    %v573 = vpop.f32.mrb[0].mxu0
    %v574 = vpop.f32.mrb[0].mxu0
    %v575 = vadd.f32 %v439, %v574
    %v576 = vpop.f32.mrb[0].mxu0
    %577 = vmatprep.mubr.bf16.mxu0 %v389
    %578 = vmatmul.mubr.bf16.gmra.mrb[0].mxu0 %v388
    %v579 = vpop.f32.mrb[0].mxu0
    %v580 = vadd.f32 %v439, %v579
    %v581 = vpop.f32.mrb[0].mxu0
    %v582 = vpop.f32.mrb[0].mxu0
    %v583 = vadd.f32 %v439, %v582
    %v584 = vpop.f32.mrb[0].mxu0
    %585 = vmatprep.mubr.bf16.mxu0 %v391
    %586 = vmatmul.mubr.bf16.gmra.mrb[0].mxu0 %v390
    %v587 = vpop.f32.mrb[0].mxu0
    %v588 = vadd.f32 %v439, %v587
    %v589 = vpop.f32.mrb[0].mxu0
    %v590 = vpop.f32.mrb[0].mxu0
    %v591 = vadd.f32 %v439, %v590
    %v592 = vpop.f32.mrb[0].mxu0
    %593 = vmatprep.mubr.bf16.mxu0 %v393
    %594 = vmatmul.mubr.bf16.gmra.mrb[0].mxu0 %v392
    %v595 = vpop.f32.mrb[0].mxu0
    %v596 = vadd.f32 %v439, %v595
    %v597 = vpop.f32.mrb[0].mxu0
    %v598 = vpop.f32.mrb[0].mxu0
    %v599 = vadd.f32 %v439, %v598
    %v600 = vpop.f32.mrb[0].mxu0
    %601 = vmatprep.mubr.bf16.mxu0 %v395
    %602 = vmatmul.mubr.bf16.gmra.mrb[0].mxu0 %v394
    %v603 = vpop.f32.mrb[0].mxu0
    %v604 = vadd.f32 %v439, %v603
    %v605 = vpop.f32.mrb[0].mxu0
    %v606 = vpop.f32.mrb[0].mxu0
    %v607 = vadd.f32 %v439, %v606
    %v608 = vpop.f32.mrb[0].mxu0
    %609 = vmatprep.mubr.bf16.mxu0 %v397
    %610 = vmatmul.mubr.bf16.gmra.mrb[0].mxu0 %v396
    %v611 = vpop.f32.mrb[0].mxu0
    %v612 = vadd.f32 %v439, %v611
    %v613 = vpop.f32.mrb[0].mxu0
    %v614 = vpop.f32.mrb[0].mxu0
    %v615 = vadd.f32 %v439, %v614
    %v616 = vpop.f32.mrb[0].mxu0
    %617 = vmatprep.mubr.bf16.mxu0 %v399
    %618 = vmatmul.mubr.bf16.gmra.mrb[0].mxu0 %v398
    %v619 = vpop.f32.mrb[0].mxu0
    %v620 = vadd.f32 %v439, %v619
    %v621 = vpop.f32.mrb[0].mxu0
    %v622 = vpop.f32.mrb[0].mxu0
    %v623 = vadd.f32 %v439, %v622
    %v624 = vpop.f32.mrb[0].mxu0
    %625 = vmatprep.mubr.bf16.mxu0 %v401
    %626 = vmatmul.mubr.bf16.gmra.mrb[0].mxu0 %v400
    %v627 = vpop.f32.mrb[0].mxu0
    %v628 = vadd.f32 %v439, %v627
    %v629 = vpop.f32.mrb[0].mxu0
    %v630 = vpop.f32.mrb[0].mxu0
    %v631 = vadd.f32 %v439, %v630
    %v632 = vpop.f32.mrb[0].mxu0
    %633 = vdwg.mxu0
    %v634 = vmax.f32 %v572, 0.0
    %v635 = vmax.f32 %v575, 0.0
    %v636 = vmax.f32 %v580, 0.0
    %v637 = vmax.f32 %v583, 0.0
    %v638 = vmax.f32 %v588, 0.0
    %v639 = vmax.f32 %v591, 0.0
    %v640 = vmax.f32 %v596, 0.0
    %v641 = vmax.f32 %v599, 0.0
    %v642 = vmax.f32 %v604, 0.0
    %v643 = vmax.f32 %v607, 0.0
    %v644 = vmax.f32 %v612, 0.0
    %v645 = vmax.f32 %v615, 0.0
    %v646 = vmax.f32 %v620, 0.0
    %v647 = vmax.f32 %v623, 0.0
    %v648 = vmax.f32 %v628, 0.0
    %v649 = vmax.f32 %v631, 0.0
    %v650 = vpack.c.bf16 %v635, %v634
    %v651 = vpack.c.bf16 %v637, %v636
    %v652 = vpack.c.bf16 %v639, %v638
    %v653 = vpack.c.bf16 %v641, %v640
    %v654 = vpack.c.bf16 %v643, %v642
    %v655 = vpack.c.bf16 %v645, %v644
    %v656 = vpack.c.bf16 %v647, %v646
    %v657 = vpack.c.bf16 %v649, %v648
    %v658 = vld [vmem:[%s5] sm:$0x3]
    %v659 = vld [vmem:[%s6] sm:$0xf]
    %661 = vset.pattern.permute.xlu0 0
    %662 = vperm.xlu0 %661, %v659
    %v663 = vpop.permute.xlu0 %662
    %665 = vmatprep.subr.bf16.mxu0 0
    %666 = vmatpush1.bf16.xpose.msra.mxu0 %v650
    %667 = vmatprep.subr.bf16.mxu0 0
    %668 = vmatpush1.bf16.xpose.msra.mxu0 %v651
    %669 = vmatprep.subr.bf16.mxu0 0
    %670 = vmatpush1.bf16.xpose.msra.mxu0 %v652
    %671 = vmatprep.subr.bf16.mxu0 0
    %672 = vmatpush1.bf16.xpose.msra.mxu0 %v653
    %673 = vmatprep.subr.bf16.mxu0 0
    %674 = vmatpush1.bf16.xpose.msra.mxu0 %v654
    %675 = vmatprep.subr.bf16.mxu0 0
    %676 = vmatpush1.bf16.xpose.msra.mxu0 %v655
    %677 = vmatprep.subr.bf16.mxu0 0
    %678 = vmatpush1.bf16.xpose.msra.mxu0 %v656
    %679 = vmatprep.subr.bf16.mxu0 0
    %680 = vmatpush1.bf16.xpose.msra.mxu0 %v657
    %681 = vmatprep.subr.bf16.mxu0 0
    %682 = vmatpush1.bf16.xpose.msra.mxu0 0
    %683 = vmatprep.subr.bf16.mxu0 0
    %684 = vmatpush1.bf16.xpose.msra.mxu0 0
    %685 = vmatprep.subr.bf16.mxu0 0
    %686 = vmatpush1.bf16.xpose.msra.mxu0 0
    %687 = vmatprep.subr.bf16.mxu0 0
    %688 = vmatpush1.bf16.xpose.msra.mxu0 0
    %689 = vmatprep.subr.bf16.mxu0 0
    %690 = vmatpush1.bf16.xpose.msra.mxu0 0
    %691 = vmatprep.subr.bf16.mxu0 0
    %692 = vmatpush1.bf16.xpose.msra.mxu0 0
    %693 = vmatprep.subr.bf16.mxu0 0
    %694 = vmatpush1.bf16.xpose.msra.mxu0 0
    %695 = vmatprep.subr.bf16.mxu0 0
    %696 = vmatpush1.bf16.xpose.msra.mxu0 0
    %697 = vmatprep.mubr.bf16.mxu0 0
    %698 = vmatmul.mubr.bf16.gmra.mrb[0].mxu0 %v658
    %v699 = vpop.f32.mrb[0].mxu0
    %v700 = vadd.f32 %v663, %v699
    %v701 = vpop.f32.mrb[0].mxu0
    %v702 = vpop.f32.mrb[0].mxu0
    %v703 = vpop.f32.mrb[0].mxu0
    %704 = vdwg.mxu0
    %v705 = vxor.u32 %v700, 2147483648
    %v706 = vmul.f32 %v705, 1.442695
    %v707 = vpow.pop %v706
    %v708 = vadd.f32 %v707, 1.0
    %v709 = vrcp.pop %v708
    %v710 = vmul.f32 1.0, %v709
    %711 = vst [vmem:[#allocation8] sm:$0xf] %v710
    // Predicated region
    $region42: #{tpu_custom_call.1} parent=1 // pred_check
      _
    $region43: #{tpu_custom_call.1} parent=1 // pred_check_branch
      %713 = sbr.rel (0) target = $region45
    $region44: #{tpu_custom_call.1} parent=1 // pred_region
      %s715 = ssub.s32 64, 64
      %716 = vsyncadd [#allocation4], %s715
      %s718 = sshll.u32 [#allocation8], 4
      %s719 = int_to_ptr.vmem [resolvable:$true] %s718
      %721 = dma.vmem_to_hbm [thread:$0]  %s719, 64, %s7, [#allocation4]
    $region45: #{tpu_custom_call.1} parent=1 // pred_fallthru
      _
    // Predicated region
    $region46: #{tpu_custom_call.1} parent=1 // pred_check
      _
    $region47: #{tpu_custom_call.1} parent=1 // pred_check_branch
      %723 = sbr.rel (0) target = $region49
    $region48: #{tpu_custom_call.1} parent=1 // pred_region
      %724 = dma.done [#allocation4], 64
    $region49: #{tpu_custom_call.1} parent=1 // pred_fallthru
      _
    %725 = vsyncpa [#allocation3], 1
    %726 = vsyncpa [#allocation6], 1
    %727 = vsyncpa [#allocation4], 1

</llo_original>
